<compile_context>
chip_gen: v7x
topology: tpu7x:2x2x1
jax: 0.10.0
libtpu: 0.0.40
codegen_flags: <defaults>
</compile_context>

<pallas_src>
import math

import jax
import jax.numpy as jnp
from jax.experimental import pallas as pl
from jax.experimental.pallas import tpu as pltpu


# ----------------------------------------------------------------------------
# Kernel 1: conv1 + BN1 + ReLU + Frobenius normalisations + concat -> pointfeat
# ----------------------------------------------------------------------------
def _pointfeat_kernel(x1_ref, x2_ref, w1_ref, s1_ref, b1_ref, pf_ref):
    x1 = x1_ref[0]                                           # (N, in_k)  f32
    x2 = x2_ref[0]                                           # (N, 64)    f32

    # conv1 (1x1) + folded BN1 + ReLU.  K dim is tiny (in_k=3) -> keep f32.
    y = jnp.dot(x1, w1_ref[...], preferred_element_type=jnp.float32)     # (N, 64)
    y = jnp.maximum(y * s1_ref[...] + b1_ref[...], 0.0)

    # Per-sample Frobenius norms (over the full (N, 64) slab).
    inv1 = jax.lax.rsqrt(jnp.sum(y * y, axis=(0, 1), keepdims=True))     # (1, 1)
    inv2 = jax.lax.rsqrt(jnp.sum(x2 * x2, axis=(0, 1), keepdims=True))   # (1, 1)

    # Lane-dense 128-wide concat written in a single unmasked store.
    pf_ref[0] = jnp.concatenate([y * inv1, x2 * inv2], axis=-1)          # (N, 128)


def pointfeat_fused(input1, input2, w1, s1, b1):
    B, N, in_k = input1.shape
    return pl.pallas_call(
        _pointfeat_kernel,
        out_shape=jax.ShapeDtypeStruct((B, N, 128), jnp.float32),
        grid=(B,),
        in_specs=[
            pl.BlockSpec((1, N, in_k), lambda b: (b, 0, 0)),
            pl.BlockSpec((1, N, 64), lambda b: (b, 0, 0)),
            pl.BlockSpec((in_k, 64), lambda b: (0, 0)),
            pl.BlockSpec((1, 64), lambda b: (0, 0)),
            pl.BlockSpec((1, 64), lambda b: (0, 0)),
        ],
        out_specs=pl.BlockSpec((1, N, 128), lambda b: (b, 0, 0)),
        compiler_params=pltpu.CompilerParams(
            dimension_semantics=("parallel",),
            vmem_limit_bytes=32 * 1024 * 1024),
    )(input1, input2, w1, s1, b1)


# ----------------------------------------------------------------------------
# Kernel 2: conv2+BN2+ReLU -> conv3+BN3 (h) -> streaming max -> fc1/fc2 head
# ----------------------------------------------------------------------------
def _trunk_head_kernel(pf_ref, w2_ref, s2_ref, b2_ref, w3_ref, s3_ref, b3_ref,
                       w4_ref, s4_ref, b4_ref, w5_ref, s5_ref, b5_ref,
                       h_ref, f1_ref, feat_ref):
    n = pl.program_id(1)
    nt = pl.num_programs(1)

    @pl.when(n == 0)
    def _init():
        f1_ref[...] = jnp.full(f1_ref.shape, -jnp.inf, jnp.float32)

    # conv2 (128 -> 256) + folded BN2 + ReLU  (bf16 operands, f32 accumulate)
    pf = pf_ref[0].astype(jnp.bfloat16)                                   # (TN, 128)
    y2 = jnp.dot(pf, w2_ref[...], preferred_element_type=jnp.float32)     # (TN, 256)
    y2 = jnp.maximum(y2 * s2_ref[...] + b2_ref[...], 0.0)

    # conv3 (256 -> 1024) + folded BN3 (NO ReLU, per reference module)
    y3 = jnp.dot(y2.astype(jnp.bfloat16), w3_ref[...],
                 preferred_element_type=jnp.float32)                      # (TN, 1024)
    y3 = y3 * s3_ref[...] + b3_ref[...]

    # Stream h out (lane-dense 1024-wide) and keep a resident running max.
    h_ref[0] = y3
    f1_ref[...] = jnp.maximum(f1_ref[...], jnp.max(y3, axis=0, keepdims=True))

    # Head (fc1+BN4+ReLU, fc2+BN5+ReLU, dropout == identity) on the last tile.
    @pl.when(n == nt - 1)
    def _final():
        g = f1_ref[...]                                                   # (1, 1024)
        z = jnp.dot(g.astype(jnp.bfloat16), w4_ref[...],
                    preferred_element_type=jnp.float32)                   # (1, 512)
        z = jnp.maximum(z * s4_ref[...] + b4_ref[...], 0.0)
        z = jnp.dot(z.astype(jnp.bfloat16), w5_ref[...],
                    preferred_element_type=jnp.float32)                   # (1, 256)
        z = jnp.maximum(z * s5_ref[...] + b5_ref[...], 0.0)
        feat_ref[...] = z


def _pick_tile(n):
    for t in (512, 256, 128, 64, 32, 16, 8):
        if n % t == 0:
            return t
    return n


def trunk_and_head(pointfeat, p):
    B, N, _ = pointfeat.shape
    TN = _pick_tile(N)
    grid = (B, N // TN if N % TN == 0 else 1)
    const2 = lambda b, n: (0, 0)
    return pl.pallas_call(
        _trunk_head_kernel,
        out_shape=(
            jax.ShapeDtypeStruct((B, N, 1024), jnp.float32),   # h
            jax.ShapeDtypeStruct((B, 1024), jnp.float32),      # features1 (global max)
            jax.ShapeDtypeStruct((B, 256), jnp.float32),       # features
        ),
        grid=grid,
        in_specs=[
            pl.BlockSpec((1, TN, 128), lambda b, n: (b, n, 0)),
            pl.BlockSpec((128, 256), const2),
            pl.BlockSpec((1, 256), const2),
            pl.BlockSpec((1, 256), const2),
            pl.BlockSpec((256, 1024), const2),
            pl.BlockSpec((1, 1024), const2),
            pl.BlockSpec((1, 1024), const2),
            pl.BlockSpec((1024, 512), const2),
            pl.BlockSpec((1, 512), const2),
            pl.BlockSpec((1, 512), const2),
            pl.BlockSpec((512, 256), const2),
            pl.BlockSpec((1, 256), const2),
            pl.BlockSpec((1, 256), const2),
        ],
        out_specs=(
            pl.BlockSpec((1, TN, 1024), lambda b, n: (b, n, 0)),
            pl.BlockSpec((1, 1024), lambda b, n: (b, 0)),
            pl.BlockSpec((1, 256), lambda b, n: (b, 0)),
        ),
        compiler_params=pltpu.CompilerParams(
            dimension_semantics=("parallel", "arbitrary"),
            vmem_limit_bytes=32 * 1024 * 1024),
    )(pointfeat, p["w2"], p["s2"], p["b2"], p["w3"], p["s3"], p["b3"],
      p["w4"], p["s4"], p["b4"], p["w5"], p["s5"], p["b5"])


# ----------------------------------------------------------------------------
# Forward pass (PyTorch layout in / PyTorch layout out)
# ----------------------------------------------------------------------------
def pointnetfeat2_forward(x, params):
    """x: (B, 64 + in_k, N) float32.  Returns (features, features1, pointfeat, h)."""
    x = x.astype(jnp.float32)
    B, C, N = x.shape
    in_k = C - 64
    assert in_k >= 1

    input1 = jnp.transpose(x[:, 64:, :], (0, 2, 1))        # (B, N, in_k)
    input2 = jnp.transpose(x[:, :64, :], (0, 2, 1))        # (B, N, 64)

    pointfeat_nl = pointfeat_fused(input1, input2,
                                   params["w1"], params["s1"], params["b1"])  # (B, N, 128)

    h_nl, features1, features = trunk_and_head(pointfeat_nl, params)

    # Match PyTorch (B, C, N) layout for the per-point outputs.
    pointfeat = jnp.transpose(pointfeat_nl, (0, 2, 1))     # (B, 128, N)
    h = jnp.transpose(h_nl, (0, 2, 1))                     # (B, 1024, N)
    return features, features1, pointfeat, h


# ----------------------------------------------------------------------------
# Pure-JAX reference (mirrors the kernel's bf16 operand strategy) for checking.
# ----------------------------------------------------------------------------
def pointnetfeat2_reference(x, p):
    x = x.astype(jnp.float32)
    input1 = jnp.transpose(x[:, 64:, :], (0, 2, 1))        # (B, N, in_k)
    input2 = jnp.transpose(x[:, :64, :], (0, 2, 1))        # (B, N, 64)

    y = jnp.einsum("bnk,kc->bnc", input1, p["w1"],
                   preferred_element_type=jnp.float32)
    y = jnp.maximum(y * p["s1"] + p["b1"], 0.0)
    inv1 = jax.lax.rsqrt(jnp.sum(y * y, axis=(1, 2), keepdims=True))
    inv2 = jax.lax.rsqrt(jnp.sum(input2 * input2, axis=(1, 2), keepdims=True))
    pf = jnp.concatenate([y * inv1, input2 * inv2], axis=-1)             # (B, N, 128)

    y2 = jnp.einsum("bnc,cd->bnd", pf.astype(jnp.bfloat16), p["w2"],
                    preferred_element_type=jnp.float32)
    y2 = jnp.maximum(y2 * p["s2"] + p["b2"], 0.0)
    y3 = jnp.einsum("bnc,cd->bnd", y2.astype(jnp.bfloat16), p["w3"],
                    preferred_element_type=jnp.float32)
    h = y3 * p["s3"] + p["b3"]                                           # (B, N, 1024)

    f1 = jnp.max(h, axis=1)                                              # (B, 1024)
    z = jnp.dot(f1.astype(jnp.bfloat16), p["w4"],
                preferred_element_type=jnp.float32)
    z = jnp.maximum(z * p["s4"] + p["b4"], 0.0)
    z = jnp.dot(z.astype(jnp.bfloat16), p["w5"],
                preferred_element_type=jnp.float32)
    feat = jnp.maximum(z * p["s5"] + p["b5"], 0.0)                       # (B, 256)

    return feat, f1, jnp.transpose(pf, (0, 2, 1)), jnp.transpose(h, (0, 2, 1))


# ----------------------------------------------------------------------------
# Deterministic synthetic parameters (eval-mode BN + biases folded to scale/shift)
# ----------------------------------------------------------------------------
def _fold_bn(bias, gamma, beta, mean, var, eps=1e-5):
    scale = gamma / jnp.sqrt(var + eps)
    shift = beta + (bias - mean) * scale
    return scale[None, :].astype(jnp.float32), shift[None, :].astype(jnp.float32)


def _rand_bn(key, c):
    k1, k2, k3, k4 = jax.random.split(key, 4)
    gamma = 1.0 + 0.1 * jax.random.normal(k1, (c,), jnp.float32)
    beta = 0.1 * jax.random.normal(k2, (c,), jnp.float32)
    mean = 0.1 * jax.random.normal(k3, (c,), jnp.float32)
    var = 1.0 + 0.1 * jax.random.uniform(k4, (c,), jnp.float32)
    return gamma, beta, mean, var


def _weight(key, cin, cout, dtype=jnp.float32):
    w = jax.random.normal(key, (cin, cout), jnp.float32) / math.sqrt(cin)
    return w.astype(dtype)


def init_params(key, in_k=3):
    ks = jax.random.split(key, 10)
    p = {}

    def layer(kw_key, kbn_key, cin, cout, dtype):
        kw, kb = jax.random.split(kw_key, 2)
        w = _weight(kw, cin, cout, dtype)
        bias = 0.1 * jax.random.normal(kb, (cout,), jnp.float32)
        s, b = _fold_bn(bias, *_rand_bn(kbn_key, cout))
        return w, s, b

    # conv1 (in_k->64)+BN1: tiny K, keep weight f32.
    p["w1"], p["s1"], p["b1"] = layer(ks[0], ks[1], in_k, 64, jnp.float32)
    # conv2 (128->256)+BN2, conv3 (256->1024)+BN3: bf16 weights for MXU.
    p["w2"], p["s2"], p["b2"] = layer(ks[2], ks[3], 128, 256, jnp.bfloat16)
    p["w3"], p["s3"], p["b3"] = layer(ks[4], ks[5], 256, 1024, jnp.bfloat16)
    # fc1 (1024->512)+BN4, fc2 (512->256)+BN5 (dropout identity).
    p["w4"], p["s4"], p["b4"] = layer(ks[6], ks[7], 1024, 512, jnp.bfloat16)
    p["w5"], p["s5"], p["b5"] = layer(ks[8], ks[9], 512, 256, jnp.bfloat16)
    return p


# ----------------------------------------------------------------------------
if __name__ == "__main__":
    B, IN_K, N_PTS = 2, 3, 32                       # module implies C = 64 + in_k = 67
    key = jax.random.PRNGKey(0)
    kx, kp = jax.random.split(key)
    x = jax.random.normal(kx, (B, 64 + IN_K, N_PTS), dtype=jnp.float32)
    params = init_params(kp, in_k=IN_K)

    outs = jax.block_until_ready(pointnetfeat2_forward(x, params))
    features, features1, pointfeat, h = outs

    # Shape / dtype / finiteness checks.
    assert features.shape == (B, 256)
    assert features1.shape == (B, 1024)
    assert pointfeat.shape == (B, 128, N_PTS)
    assert h.shape == (B, 1024, N_PTS)
    for t in outs:
        assert t.dtype == jnp.float32
        assert bool(jnp.all(jnp.isfinite(t)))

    # Numerical check against a pure-JAX reference with the same dtype strategy.
    refs = jax.block_until_ready(pointnetfeat2_reference(x, params))
    names = ("features", "features1", "pointfeat", "h")
    for name, got, ref in zip(names, outs, refs):
        err = float(jnp.max(jnp.abs(got - ref)))
        scale = float(jnp.max(jnp.abs(ref))) + 1e-6
        assert err <= 2e-2 * scale + 2e-2, f"{name}: max abs err {err} (scale {scale})"

    print("KERNEL_OK")
</pallas_src>

<mosaic_0001>
module attributes {stable_mosaic.version = 11 : i64} {
  func.func @_pointfeat_kernel(%arg0: i32, %arg1: memref<1x32x3xf32, #tpu.memory_space<vmem>>, %arg2: memref<1x32x64xf32, #tpu.memory_space<vmem>>, %arg3: memref<3x64xf32, #tpu.memory_space<vmem>>, %arg4: memref<1x64xf32, #tpu.memory_space<vmem>>, %arg5: memref<1x64xf32, #tpu.memory_space<vmem>>, %arg6: memref<1x32x128xf32, #tpu.memory_space<vmem>>) attributes {dimension_semantics = [#tpu.dimension_semantics<parallel>], iteration_bounds = array<i64: 2>, scalar_prefetch = 0 : i64, scratch_operands = 0 : i64, tpu.core_type = #tpu.core_type<tc>, window_params = [{transform_indices = @transform_0, window_bounds = array<i64: 1, 32, 3>}, {transform_indices = @transform_1, window_bounds = array<i64: 1, 32, 64>}, {pipeline_mode = #tpu.pipeline_mode<synchronous>, transform_indices = @transform_2, window_bounds = array<i64: 3, 64>}, {pipeline_mode = #tpu.pipeline_mode<synchronous>, transform_indices = @transform_3, window_bounds = array<i64: 1, 64>}, {pipeline_mode = #tpu.pipeline_mode<synchronous>, transform_indices = @transform_4, window_bounds = array<i64: 1, 64>}, {transform_indices = @transform_5, window_bounds = array<i64: 1, 32, 128>}]} {
    %c0 = arith.constant 0 : index
    %c0_0 = arith.constant 0 : index
    %c0_1 = arith.constant 0 : index
    %0 = vector.load %arg1[%c0, %c0_0, %c0_1] : memref<1x32x3xf32, #tpu.memory_space<vmem>>, vector<1x32x3xf32>
    %1 = vector.shape_cast %0 : vector<1x32x3xf32> to vector<32x3xf32>
    %c0_2 = arith.constant 0 : index
    %c0_3 = arith.constant 0 : index
    %c0_4 = arith.constant 0 : index
    %2 = vector.load %arg2[%c0_2, %c0_3, %c0_4] : memref<1x32x64xf32, #tpu.memory_space<vmem>>, vector<1x32x64xf32>
    %3 = vector.shape_cast %2 : vector<1x32x64xf32> to vector<32x64xf32>
    %c0_5 = arith.constant 0 : index
    %c0_6 = arith.constant 0 : index
    %4 = vector.load %arg3[%c0_5, %c0_6] : memref<3x64xf32, #tpu.memory_space<vmem>>, vector<3x64xf32>
    %cst = arith.constant dense<0.000000e+00> : vector<32x64xf32>
    %5 = tpu.matmul %1, %4, %cst {dimension_numbers = #tpu.dot_dimension_numbers<[1], [0], [0], [1], [0, 0, 1, 1], [], []>} : vector<32x3xf32>, vector<3x64xf32>, vector<32x64xf32> -> vector<32x64xf32>
    %c0_7 = arith.constant 0 : index
    %c0_8 = arith.constant 0 : index
    %6 = vector.load %arg4[%c0_7, %c0_8] : memref<1x64xf32, #tpu.memory_space<vmem>>, vector<1x64xf32>
    %7 = vector.broadcast %6 : vector<1x64xf32> to vector<32x64xf32>
    %8 = arith.mulf %5, %7 : vector<32x64xf32>
    %c0_9 = arith.constant 0 : index
    %c0_10 = arith.constant 0 : index
    %9 = vector.load %arg5[%c0_9, %c0_10] : memref<1x64xf32, #tpu.memory_space<vmem>>, vector<1x64xf32>
    %10 = vector.broadcast %9 : vector<1x64xf32> to vector<32x64xf32>
    %11 = arith.addf %8, %10 : vector<32x64xf32>
    %cst_11 = arith.constant 0.000000e+00 : f32
    %12 = vector.broadcast %cst_11 : f32 to vector<32x64xf32>
    %13 = arith.maximumf %11, %12 : vector<32x64xf32>
    %14 = arith.mulf %13, %13 : vector<32x64xf32>
    %15 = vector.shape_cast %14 : vector<32x64xf32> to vector<1x32x64xf32>
    %cst_12 = arith.constant dense<0.000000e+00> : vector<1xf32>
    %16 = vector.multi_reduction <add>, %15, %cst_12 [1, 2] : vector<1x32x64xf32> to vector<1xf32>
    %17 = vector.shape_cast %16 : vector<1xf32> to vector<1x1x1xf32>
    %18 = vector.extract %17[0, 0, 0] : f32 from vector<1x1x1xf32>
    %19 = vector.broadcast %18 : f32 to vector<1x1xf32>
    %20 = math.rsqrt %19 : vector<1x1xf32>
    %21 = arith.mulf %3, %3 : vector<32x64xf32>
    %22 = vector.shape_cast %21 : vector<32x64xf32> to vector<1x32x64xf32>
    %cst_13 = arith.constant dense<0.000000e+00> : vector<1xf32>
    %23 = vector.multi_reduction <add>, %22, %cst_13 [1, 2] : vector<1x32x64xf32> to vector<1xf32>
    %24 = vector.shape_cast %23 : vector<1xf32> to vector<1x1x1xf32>
    %25 = vector.extract %24[0, 0, 0] : f32 from vector<1x1x1xf32>
    %26 = vector.broadcast %25 : f32 to vector<1x1xf32>
    %27 = math.rsqrt %26 : vector<1x1xf32>
    %28 = vector.broadcast %20 : vector<1x1xf32> to vector<32x64xf32>
    %29 = arith.mulf %13, %28 : vector<32x64xf32>
    %30 = vector.broadcast %27 : vector<1x1xf32> to vector<32x64xf32>
    %31 = arith.mulf %3, %30 : vector<32x64xf32>
    %32 = tpu.concatenate %29, %31 in 1 : vector<32x64xf32>, vector<32x64xf32> -> vector<32x128xf32>
    %c0_14 = arith.constant 0 : index
    %c0_15 = arith.constant 0 : index
    %c0_16 = arith.constant 0 : index
    %33 = vector.load %arg6[%c0_14, %c0_15, %c0_16] : memref<1x32x128xf32, #tpu.memory_space<vmem>>, vector<1x32x128xf32>
    %34 = vector.shape_cast %33 : vector<1x32x128xf32> to vector<32x128xf32>
    %35 = vector.shape_cast %32 : vector<32x128xf32> to vector<1x32x128xf32>
    tpu.vector_store %arg6[%c0_14, %c0_15, %c0_16], %35 {strides = array<i32>} : memref<1x32x128xf32, #tpu.memory_space<vmem>>, vector<1x32x128xf32>,
    return
  }
  func.func @transform_0(%arg0: i32) -> (i32, i32, i32) {
    %c0_i32 = arith.constant 0 : i32
    %c0_i32_0 = arith.constant 0 : i32
    %c0_i32_1 = arith.constant 0 : i32
    return %arg0, %c0_i32, %c0_i32_0 : i32, i32, i32
  }
  func.func @transform_1(%arg0: i32) -> (i32, i32, i32) {
    %c0_i32 = arith.constant 0 : i32
    %c0_i32_0 = arith.constant 0 : i32
    %c0_i32_1 = arith.constant 0 : i32
    return %arg0, %c0_i32, %c0_i32_0 : i32, i32, i32
  }
  func.func @transform_2(%arg0: i32) -> (i32, i32) {
    %c0_i32 = arith.constant 0 : i32
    %c0_i32_0 = arith.constant 0 : i32
    %c0_i32_1 = arith.constant 0 : i32
    return %c0_i32, %c0_i32_0 : i32, i32
  }
  func.func @transform_3(%arg0: i32) -> (i32, i32) {
    %c0_i32 = arith.constant 0 : i32
    %c0_i32_0 = arith.constant 0 : i32
    %c0_i32_1 = arith.constant 0 : i32
    return %c0_i32, %c0_i32_0 : i32, i32
  }
  func.func @transform_4(%arg0: i32) -> (i32, i32) {
    %c0_i32 = arith.constant 0 : i32
    %c0_i32_0 = arith.constant 0 : i32
    %c0_i32_1 = arith.constant 0 : i32
    return %c0_i32, %c0_i32_0 : i32, i32
  }
  func.func @transform_5(%arg0: i32) -> (i32, i32, i32) {
    %c0_i32 = arith.constant 0 : i32
    %c0_i32_0 = arith.constant 0 : i32
    %c0_i32_1 = arith.constant 0 : i32
    return %arg0, %c0_i32, %c0_i32_0 : i32, i32, i32
  }
}

</mosaic_0001>

<llo_original>
// kernel: tpu_custom_call.1
$region0: #{tpu_custom_call.1}
  #allocation0 [shape = 'u32[]', space=smem, size = 0x4, offset = 0x4, fixed_abs, tag = 'smem constant byte address 0x4 - core index']
  #allocation1 [shape = 'u32[144,128]{1,0:T(1,128)}', space=vmem, size = 0x12000, scoped, tag = 'internal scratch']
  %s0 = inlined_call_operand.vmem [shape: f32[2,32,3], index: 0, kind: input, shape index: {}]
  %s1 = inlined_call_operand.vmem [shape: f32[2,32,64], index: 1, kind: input, shape index: {}]
  %s2 = inlined_call_operand.vmem [shape: f32[3,64], index: 2, kind: input, shape index: {}]
  %s3 = inlined_call_operand.vmem [shape: f32[1,64], index: 3, kind: input, shape index: {}]
  %s4 = inlined_call_operand.vmem [shape: f32[1,64], index: 4, kind: input, shape index: {}]
  %s5 = inlined_call_operand.hbm [shape: f32[2,32,128], index: 5, kind: output, shape index: {}]
  %s6 = sld [smem:[#allocation0]]
  $region53: #{tpu_custom_call.1} parent=0
    _
  %s8 = ssub.s32 1, %s6
  %s9 = scalar_select 0, %s8, %s6
  $region1: #{tpu_custom_call.1} parent=0
    #allocation2 [shape = 'u8[32768]{0}', space=vmem, size = 0x8000, scoped, tag = 'output window, operand 0']
    #allocation3 [shape = 's32[2]{0}', space=sflag, size = 0x8, scoped, tag = 'scoped memory for tpu_custom_call.1']
    %10 = vsyncpa [#allocation3], 0
    %s11 = scalar_lea.sflag [#allocation3], 1
    %12 = vsyncpa %s11, 0
    loop: start=0, step=1, limit=4
    $region2: #{tpu_custom_call.1} parent=1 // loop_pre_header
      _
    $region3: #{tpu_custom_call.1} parent=1 // loop_header
      %s14 = sphi 0, %s18
      %p15 = scmp.ge.s32.totalorder %s14, 4
      %s24 = sphi 0, %s26
      %s27 = sphi 0, %s24
      %s28 = sphi 0, %s27
      %s44 = sphi 0, %s28
      %s50 = sphi 0, %s52
      %s53 = sphi 0, %s50
      %s54 = sphi 0, %s53
      %s70 = sphi 0, %s54
      %s74 = sphi 0, %s74
      %s76 = sphi 0, %s74
      %s77 = sphi 0, %s76
      %s91 = sphi 0, %s77
      %s95 = sphi 0, %s95
      %s97 = sphi 0, %s95
      %s98 = sphi 0, %s97
      %s112 = sphi 0, %s98
      %s116 = sphi 0, %s116
      %s118 = sphi 0, %s116
      %s119 = sphi 0, %s118
      %s133 = sphi 0, %s119
      %s139 = sphi 0, %s141
      %s142 = sphi 0, %s139
      %s143 = sphi 0, %s142
      %s159 = sphi 0, %s143
    $region4: #{tpu_custom_call.1} parent=1 // loop_header_branch
      %17 = sbr.rel (%p15) target = $region8
    $region5: #{tpu_custom_call.1} parent=1 // loop_body
      %s19 = ssub.s32 %s14, 1
      %s20 = ssub.s32 %s14, 2
      %s21 = sadd.s32 %s14, 1
      %s22 = ssub.s32 %s14, %s21
      %p23 = scmp.eq.s32.totalorder %s22, 0
      %s25 = sadd.s32 %s24, 1
      %s26 = scalar_select %p23, %s24, %s25
      %p29 = pneg %p23
      %p30 = scmp.eq.s32.totalorder %s14, 1
      %p31 = por %p29, %p30
      %p32 = scmp.ne.s32.totalorder %s24, %s27
      %p33 = scmp.eq.s32.totalorder %s14, 0
      %p34 = por %p32, %p33
      %p35 = scmp.ne.s32.totalorder %s24, %s27
      %p36 = scmp.eq.s32.totalorder %s19, 1
      %p37 = por %p35, %p36
      %p38 = scmp.ne.s32.totalorder %s27, %s28
      %p39 = scmp.eq.s32.totalorder %s19, 0
      %p40 = por %p38, %p39
      %p41 = scmp.ne.s32.totalorder %s27, %s28
      %p42 = scmp.eq.s32.totalorder %s20, 1
      %p43 = por %p41, %p42
      %p45 = scmp.ne.s32.totalorder %s28, %s44
      %p46 = scmp.eq.s32.totalorder %s20, 0
      %p47 = por %p45, %p46
      %s48 = ssub.s32 %s14, %s21
      %p49 = scmp.eq.s32.totalorder %s48, 0
      %s51 = sadd.s32 %s50, 1
      %s52 = scalar_select %p49, %s50, %s51
      %p55 = pneg %p49
      %p56 = scmp.eq.s32.totalorder %s14, 1
      %p57 = por %p55, %p56
      %p58 = scmp.ne.s32.totalorder %s50, %s53
      %p59 = scmp.eq.s32.totalorder %s14, 0
      %p60 = por %p58, %p59
      %p61 = scmp.ne.s32.totalorder %s50, %s53
      %p62 = scmp.eq.s32.totalorder %s19, 1
      %p63 = por %p61, %p62
      %p64 = scmp.ne.s32.totalorder %s53, %s54
      %p65 = scmp.eq.s32.totalorder %s19, 0
      %p66 = por %p64, %p65
      %p67 = scmp.ne.s32.totalorder %s53, %s54
      %p68 = scmp.eq.s32.totalorder %s20, 1
      %p69 = por %p67, %p68
      %p71 = scmp.ne.s32.totalorder %s54, %s70
      %p72 = scmp.eq.s32.totalorder %s20, 0
      %p73 = por %p71, %p72
      %s75 = sadd.s32 %s74, 1
      %p78 = scmp.eq.s32.totalorder %s14, 1
      %p79 = scmp.ne.s32.totalorder %s74, %s76
      %p80 = scmp.eq.s32.totalorder %s14, 0
      %p81 = por %p79, %p80
      %p82 = scmp.ne.s32.totalorder %s74, %s76
      %p83 = scmp.eq.s32.totalorder %s19, 1
      %p84 = por %p82, %p83
      %p85 = scmp.ne.s32.totalorder %s76, %s77
      %p86 = scmp.eq.s32.totalorder %s19, 0
      %p87 = por %p85, %p86
      %p88 = scmp.ne.s32.totalorder %s76, %s77
      %p89 = scmp.eq.s32.totalorder %s20, 1
      %p90 = por %p88, %p89
      %p92 = scmp.ne.s32.totalorder %s77, %s91
      %p93 = scmp.eq.s32.totalorder %s20, 0
      %p94 = por %p92, %p93
      %s96 = sadd.s32 %s95, 1
      %p99 = scmp.eq.s32.totalorder %s14, 1
      %p100 = scmp.ne.s32.totalorder %s95, %s97
      %p101 = scmp.eq.s32.totalorder %s14, 0
      %p102 = por %p100, %p101
      %p103 = scmp.ne.s32.totalorder %s95, %s97
      %p104 = scmp.eq.s32.totalorder %s19, 1
      %p105 = por %p103, %p104
      %p106 = scmp.ne.s32.totalorder %s97, %s98
      %p107 = scmp.eq.s32.totalorder %s19, 0
      %p108 = por %p106, %p107
      %p109 = scmp.ne.s32.totalorder %s97, %s98
      %p110 = scmp.eq.s32.totalorder %s20, 1
      %p111 = por %p109, %p110
      %p113 = scmp.ne.s32.totalorder %s98, %s112
      %p114 = scmp.eq.s32.totalorder %s20, 0
      %p115 = por %p113, %p114
      %s117 = sadd.s32 %s116, 1
      %p120 = scmp.eq.s32.totalorder %s14, 1
      %p121 = scmp.ne.s32.totalorder %s116, %s118
      %p122 = scmp.eq.s32.totalorder %s14, 0
      %p123 = por %p121, %p122
      %p124 = scmp.ne.s32.totalorder %s116, %s118
      %p125 = scmp.eq.s32.totalorder %s19, 1
      %p126 = por %p124, %p125
      %p127 = scmp.ne.s32.totalorder %s118, %s119
      %p128 = scmp.eq.s32.totalorder %s19, 0
      %p129 = por %p127, %p128
      %p130 = scmp.ne.s32.totalorder %s118, %s119
      %p131 = scmp.eq.s32.totalorder %s20, 1
      %p132 = por %p130, %p131
      %p134 = scmp.ne.s32.totalorder %s119, %s133
      %p135 = scmp.eq.s32.totalorder %s20, 0
      %p136 = por %p134, %p135
      %s137 = ssub.s32 %s14, %s21
      %p138 = scmp.eq.s32.totalorder %s137, 0
      %s140 = sadd.s32 %s139, 1
      %s141 = scalar_select %p138, %s139, %s140
      %p144 = pneg %p138
      %p145 = scmp.eq.s32.totalorder %s14, 1
      %p146 = por %p144, %p145
      %p147 = scmp.ne.s32.totalorder %s139, %s142
      %p148 = scmp.eq.s32.totalorder %s14, 0
      %p149 = por %p147, %p148
      %p150 = scmp.ne.s32.totalorder %s139, %s142
      %p151 = scmp.eq.s32.totalorder %s19, 1
      %p152 = por %p150, %p151
      %p153 = scmp.ne.s32.totalorder %s142, %s143
      %p154 = scmp.eq.s32.totalorder %s19, 0
      %p155 = por %p153, %p154
      %p156 = scmp.ne.s32.totalorder %s142, %s143
      %p157 = scmp.eq.s32.totalorder %s20, 1
      %p158 = por %p156, %p157
      %p160 = scmp.ne.s32.totalorder %s143, %s159
      %p161 = scmp.eq.s32.totalorder %s20, 0
      %p162 = por %p160, %p161
      %p163 = scmp.le.s32.totalorder 1, %s14
      %p164 = scmp.lt.s32.totalorder %s14, 3
      %p165 = pnand %p163, %p164
      %p166 = pneg %p165
      // Predicated region
      $region9: #{tpu_custom_call.1} parent=5 // pred_check
        _
      $region10: #{tpu_custom_call.1} parent=5 // pred_check_branch
        %168 = sbr.rel (%p165) target = $region12
      $region11: #{tpu_custom_call.1} parent=5 // pred_region
        %s169 = ssub.s32 %s14, 1
        // Predicated region
        $region13: #{tpu_custom_call.1} parent=11 // pred_check
          %p170 = pneg %p87
        $region14: #{tpu_custom_call.1} parent=11 // pred_check_branch
          %172 = sbr.rel (%p170) target = $region16
        $region15: #{tpu_custom_call.1} parent=11 // pred_region
          _
        $region16: #{tpu_custom_call.1} parent=11 // pred_fallthru
          _
        // Predicated region
        $region17: #{tpu_custom_call.1} parent=11 // pred_check
          %p173 = pneg %p108
        $region18: #{tpu_custom_call.1} parent=11 // pred_check_branch
          %175 = sbr.rel (%p173) target = $region20
        $region19: #{tpu_custom_call.1} parent=11 // pred_region
          _
        $region20: #{tpu_custom_call.1} parent=11 // pred_fallthru
          _
        // Predicated region
        $region21: #{tpu_custom_call.1} parent=11 // pred_check
          %p176 = pneg %p129
        $region22: #{tpu_custom_call.1} parent=11 // pred_check_branch
          %178 = sbr.rel (%p176) target = $region24
        $region23: #{tpu_custom_call.1} parent=11 // pred_region
          _
        $region24: #{tpu_custom_call.1} parent=11 // pred_fallthru
          _
      $region12: #{tpu_custom_call.1} parent=5 // pred_fallthru
        _
      %p179 = scmp.lt.s32.totalorder %s14, 2
      // Predicated region
      $region25: #{tpu_custom_call.1} parent=5 // pred_check
        %p180 = pneg %p179
      $region26: #{tpu_custom_call.1} parent=5 // pred_check_branch
        %182 = sbr.rel (%p180) target = $region28
      $region27: #{tpu_custom_call.1} parent=5 // pred_region
        // Predicated region
        $region29: #{tpu_custom_call.1} parent=27 // pred_check
          %p183 = pneg %p34
        $region30: #{tpu_custom_call.1} parent=27 // pred_check_branch
          %185 = sbr.rel (%p183) target = $region32
        $region31: #{tpu_custom_call.1} parent=27 // pred_region
          %p186 = scmp.lt.s32.totalorder %s14, 1
          %s187 = scalar_select %p186, %s14, 1
          %s188 = smul.addr %s187, 4
          %s189 = smul.addr %s188, 8
          %s190 = scalar_lea.vmem %s0, %s189
        $region32: #{tpu_custom_call.1} parent=27 // pred_fallthru
          _
        // Predicated region
        $region33: #{tpu_custom_call.1} parent=27 // pred_check
          %p191 = pneg %p60
        $region34: #{tpu_custom_call.1} parent=27 // pred_check_branch
          %193 = sbr.rel (%p191) target = $region36
        $region35: #{tpu_custom_call.1} parent=27 // pred_region
          %p194 = scmp.lt.s32.totalorder %s14, 1
          %s195 = scalar_select %p194, %s14, 1
          %s196 = smul.addr %s195, 4
          %s197 = smul.addr %s196, 8
          %s198 = scalar_lea.vmem %s1, %s197
        $region36: #{tpu_custom_call.1} parent=27 // pred_fallthru
          _
      $region28: #{tpu_custom_call.1} parent=5 // pred_fallthru
        _
      %p199 = scmp.le.s32.totalorder 1, %s14
      %p200 = scmp.lt.s32.totalorder %s14, 3
      %p201 = pnand %p199, %p200
      %p202 = pneg %p201
      // Predicated region
      $region37: #{tpu_custom_call.1} parent=5 // pred_check
        _
      $region38: #{tpu_custom_call.1} parent=5 // pred_check_branch
        %204 = sbr.rel (%p201) target = $region40
      $region39: #{tpu_custom_call.1} parent=5 // pred_region
        %s205 = ssub.s32 %s14, 1
        %p206 = scmp.lt.s32.totalorder %s19, 1
        %s207 = scalar_select %p206, %s19, 1
        %s208 = smul.addr %s207, 4
        %s209 = smul.addr %s208, 8
        %s210 = scalar_lea.vmem %s0, %s209
        %p211 = pneg %p40
        %p212 = pneg %p37
        %p213 = scmp.lt.s32.totalorder %s19, 1
        %s214 = scalar_select %p213, %s19, 1
        %s215 = smul.addr %s214, 4
        %s216 = smul.addr %s215, 8
        %s217 = scalar_lea.vmem %s1, %s216
        %p218 = pneg %p66
        %p219 = pneg %p63
        %p220 = pneg %p87
        %p221 = pneg %p84
        %p222 = pneg %p108
        %p223 = pneg %p105
        %p224 = pneg %p129
        %p225 = pneg %p126
        %p226 = pneg %p155
        %p227 = pneg %p152
        %s228 = sand.u32 %s142, 1
        %s229 = scalar_lea.sflag [#allocation3], %s228
        %s230 = sand.u32 %s142, 1
        %s231 = smul.addr %s230, 32
        %s232 = scalar_lea.vmem [#allocation2], %s231
        %p233 = scmp.lt.s32.totalorder %s19, 1
        %s234 = scalar_select %p233, %s19, 1
        %s235 = smul.addr %s234, 4
        %s236 = smul.addr %s235, 8
        %s237 = scalar_lea.vmem %s0, %s236
        %p238 = scmp.lt.s32.totalorder %s19, 1
        %s239 = scalar_select %p238, %s19, 1
        %s240 = smul.addr %s239, 4
        %s241 = smul.addr %s240, 8
        %s242 = scalar_lea.vmem %s1, %s241
        %v243 = vld [vmem:[%s237] sm:$0xff]
        %v244 = vld [vmem:[%s237 + $0x8] sm:$0xff]
        %v245 = vld [vmem:[%s237 + $0x10] sm:$0xff]
        %v246 = vld [vmem:[%s237 + $0x18] sm:$0xff]
        %v247 = vld [vmem:[%s242] sm:$0xff]
        %v248 = vld [vmem:[%s242 + $0x8] sm:$0xff]
        %v249 = vld [vmem:[%s242 + $0x10] sm:$0xff]
        %v250 = vld [vmem:[%s242 + $0x18] sm:$0xff]
        %v251 = vld [vmem:[%s2] sm:$0x7]
        %vm252 = vcmask 23552
        %v254 = vsel %vm252, %v243, 0
        %v257 = vsel %vm252, %v244, 0
        %v260 = vsel %vm252, %v245, 0
        %v263 = vsel %vm252, %v246, 0
        %vm265 = vcmask 1042432
        %v267 = vsel %vm265, %v251, 0
        %269 = vmatprep.subr.mxu0 0.0
        %270 = vmatpush1.msra.mxu0 %v267
        %271 = vmatprep.subr.mxu0 0.0
        %272 = vmatpush1.msra.mxu0 0.0
        %273 = vmatprep.subr.mxu0 0.0
        %274 = vmatpush1.msra.mxu0 0.0
        %275 = vmatprep.subr.mxu0 0.0
        %276 = vmatpush1.msra.mxu0 0.0
        %277 = vmatprep.subr.mxu0 0.0
        %278 = vmatpush1.msra.mxu0 0.0
        %279 = vmatprep.subr.mxu0 0.0
        %280 = vmatpush1.msra.mxu0 0.0
        %281 = vmatprep.subr.mxu0 0.0
        %282 = vmatpush1.msra.mxu0 0.0
        %283 = vmatprep.subr.mxu0 0.0
        %284 = vmatpush1.msra.mxu0 0.0
        %285 = vmatprep.subr.mxu0 0.0
        %286 = vmatpush1.msra.mxu0 0.0
        %287 = vmatprep.subr.mxu0 0.0
        %288 = vmatpush1.msra.mxu0 0.0
        %289 = vmatprep.subr.mxu0 0.0
        %290 = vmatpush1.msra.mxu0 0.0
        %291 = vmatprep.subr.mxu0 0.0
        %292 = vmatpush1.msra.mxu0 0.0
        %293 = vmatprep.subr.mxu0 0.0
        %294 = vmatpush1.msra.mxu0 0.0
        %295 = vmatprep.subr.mxu0 0.0
        %296 = vmatpush1.msra.mxu0 0.0
        %297 = vmatprep.subr.mxu0 0.0
        %298 = vmatpush1.msra.mxu0 0.0
        %299 = vmatprep.subr.mxu0 0.0
        %300 = vmatpush1.msra.mxu0 0.0
        %301 = vmatprep.subr.mxu0 0.0
        %302 = vmatpush1.msra.mxu0 0.0
        %303 = vmatprep.subr.mxu0 0.0
        %304 = vmatpush1.msra.mxu0 0.0
        %305 = vmatprep.subr.mxu0 0.0
        %306 = vmatpush1.msra.mxu0 0.0
        %307 = vmatprep.subr.mxu0 0.0
        %308 = vmatpush1.msra.mxu0 0.0
        %309 = vmatprep.subr.mxu0 0.0
        %310 = vmatpush1.msra.mxu0 0.0
        %311 = vmatprep.subr.mxu0 0.0
        %312 = vmatpush1.msra.mxu0 0.0
        %313 = vmatprep.subr.mxu0 0.0
        %314 = vmatpush1.msra.mxu0 0.0
        %315 = vmatprep.subr.mxu0 0.0
        %316 = vmatpush1.msra.mxu0 0.0
        %317 = vmatprep.subr.mxu0 0.0
        %318 = vmatpush1.msra.mxu0 0.0
        %319 = vmatprep.subr.mxu0 0.0
        %320 = vmatpush1.msra.mxu0 0.0
        %321 = vmatprep.subr.mxu0 0.0
        %322 = vmatpush1.msra.mxu0 0.0
        %323 = vmatprep.subr.mxu0 0.0
        %324 = vmatpush1.msra.mxu0 0.0
        %325 = vmatprep.subr.mxu0 0.0
        %326 = vmatpush1.msra.mxu0 0.0
        %327 = vmatprep.subr.mxu0 0.0
        %328 = vmatpush1.msra.mxu0 0.0
        %329 = vmatprep.subr.mxu0 0.0
        %330 = vmatpush1.msra.mxu0 0.0
        %331 = vmatprep.subr.mxu0 0.0
        %332 = vmatpush1.msra.mxu0 0.0
        %333 = vmatprep.mubr.f32.mxu0 0.0
        %334 = vmatmul.mubr.f32.gmra.mrb[0].mxu0 %v254
        %v335 = vpop.f32.mrb[0].mxu0
        %v336 = vadd.f32 0.0, %v335
        %v337 = vpop.f32.mrb[0].mxu0
        %338 = vmatprep.mubr.f32.mxu0 0.0
        %339 = vmatmul.mubr.f32.gmra.mrb[0].mxu0 %v257
        %v340 = vpop.f32.mrb[0].mxu0
        %v341 = vadd.f32 0.0, %v340
        %v342 = vpop.f32.mrb[0].mxu0
        %343 = vmatprep.mubr.f32.mxu0 0.0
        %344 = vmatmul.mubr.f32.gmra.mrb[0].mxu0 %v260
        %v345 = vpop.f32.mrb[0].mxu0
        %v346 = vadd.f32 0.0, %v345
        %v347 = vpop.f32.mrb[0].mxu0
        %348 = vmatprep.mubr.f32.mxu0 0.0
        %349 = vmatmul.mubr.f32.gmra.mrb[0].mxu0 %v263
        %v350 = vpop.f32.mrb[0].mxu0
        %v351 = vadd.f32 0.0, %v350
        %v352 = vpop.f32.mrb[0].mxu0
        %353 = vdwg.mxu0
        %v354 = vld [vmem:[%s3] sm:$0x1]
        %v356 = vlaneseq
        %v357 = vshrl.u32 %v356, 7
        %v358 = vsub.s32 0, %v357
        %v359 = vrot.slane %v354, %v358
        %v361 = vmul.f32 %v336, %v359
        %v362 = vmul.f32 %v341, %v359
        %v363 = vmul.f32 %v346, %v359
        %v364 = vmul.f32 %v351, %v359
        %v365 = vld [vmem:[%s4] sm:$0x1]
        %v367 = vlaneseq
        %v368 = vshrl.u32 %v367, 7
        %v369 = vsub.s32 0, %v368
        %v370 = vrot.slane %v365, %v369
        %v372 = vadd.f32 %v361, %v370
        %v373 = vadd.f32 %v362, %v370
        %v374 = vadd.f32 %v363, %v370
        %v375 = vadd.f32 %v364, %v370
        %v376 = vmax.f32 %v372, 0.0
        %v377 = vmax.f32 %v373, 0.0
        %v378 = vmax.f32 %v374, 0.0
        %v379 = vmax.f32 %v375, 0.0
        %v380 = vmul.f32 %v376, %v376
        %v381 = vmul.f32 %v377, %v377
        %v382 = vmul.f32 %v378, %v378
        %v383 = vmul.f32 %v379, %v379
        %vm384 = vcmask 523264
        %v385 = vsel %vm384, %v380, 0.0
        %v386 = vsel %vm384, %v381, 0.0
        %v387 = vadd.f32 %v385, %v386
        %v388 = vsel %vm384, %v382, 0.0
        %v389 = vadd.f32 %v387, %v388
        %v390 = vsel %vm384, %v383, 0.0
        %v391 = vadd.f32 %v389, %v390
        %392 = vadd.xlane.f32.xlu0 %v391
        %v393 = vpop.xlane.xlu0 %392
        %v394 = vrot.slane %v393, 4
        %v395 = vadd.f32 %v393, %v394
        %v396 = vrot.slane %v395, 2
        %v397 = vadd.f32 %v395, %v396
        %v398 = vrot.slane %v397, 1
        %v399 = vadd.f32 %v397, %v398
        %s400 = vtos %v399
        %v401 = vstv %s400
        %v402 = vrsqrt.pop %v401
        %v403 = vmul.f32 %v247, %v247
        %v404 = vmul.f32 %v248, %v248
        %v405 = vmul.f32 %v249, %v249
        %v406 = vmul.f32 %v250, %v250
        %v407 = vsel %vm384, %v403, 0.0
        %v408 = vsel %vm384, %v404, 0.0
        %v409 = vadd.f32 %v407, %v408
        %v410 = vsel %vm384, %v405, 0.0
        %v411 = vadd.f32 %v409, %v410
        %v412 = vsel %vm384, %v406, 0.0
        %v413 = vadd.f32 %v411, %v412
        %414 = vadd.xlane.f32.xlu0 %v413
        %v415 = vpop.xlane.xlu0 %414
        %v416 = vrot.slane %v415, 4
        %v417 = vadd.f32 %v415, %v416
        %v418 = vrot.slane %v417, 2
        %v419 = vadd.f32 %v417, %v418
        %v420 = vrot.slane %v419, 1
        %v421 = vadd.f32 %v419, %v420
        %s422 = vtos %v421
        %v423 = vstv %s422
        %v424 = vrsqrt.pop %v423
        %v425 = vmul.f32 %v376, %v402
        %v426 = vmul.f32 %v377, %v402
        %v427 = vmul.f32 %v378, %v402
        %v428 = vmul.f32 %v379, %v402
        %v429 = vmul.f32 %v247, %v424
        %v430 = vmul.f32 %v248, %v424
        %v431 = vmul.f32 %v249, %v424
        %v432 = vmul.f32 %v250, %v424
        %437 = vrot.lane.b32.xlu0 %v429, 64
        %v438 = vpop.permute.xlu0 %437
        %439 = vrot.lane.b32.xlu0 %v430, 64
        %v440 = vpop.permute.xlu0 %439
        %441 = vrot.lane.b32.xlu0 %v431, 64
        %v442 = vpop.permute.xlu0 %441
        %443 = vrot.lane.b32.xlu0 %v432, 64
        %v444 = vpop.permute.xlu0 %443
        %v449 = vsel %vm384, %v425, %v438
        %v450 = vsel %vm384, %v426, %v440
        %v451 = vsel %vm384, %v427, %v442
        %v452 = vsel %vm384, %v428, %v444
        %453 = vst [vmem:[%s232] sm:$0xff] %v449
        %454 = vst [vmem:[%s232 + $0x8] sm:$0xff] %v450
        %455 = vst [vmem:[%s232 + $0x10] sm:$0xff] %v451
        %456 = vst [vmem:[%s232 + $0x18] sm:$0xff] %v452
        %s457 = sand.u32 %s142, 1
        %s458 = scalar_lea.sflag [#allocation3], %s457
        %s459 = sand.u32 %s142, 1
        %s460 = smul.addr %s459, 32
        %s461 = scalar_lea.vmem [#allocation2], %s460
        // Predicated region
        $region41: #{tpu_custom_call.1} parent=39 // pred_check
          %p462 = pneg %p152
        $region42: #{tpu_custom_call.1} parent=39 // pred_check_branch
          %464 = sbr.rel (%p462) target = $region44
        $region43: #{tpu_custom_call.1} parent=39 // pred_region
          %s466 = ssub.s32 512, 512
          %467 = vsyncadd %s458, %s466
          %s468 = smul.addr %s19, 4
          %s469 = smul.addr %s468, 128
          %s470 = scalar_lea.hbm %s5, %s469
          %s471 = sshll.u32 %s461, 4
          %s472 = int_to_ptr.vmem [resolvable:$true] %s471
          %477 = dma.vmem_to_hbm [thread:$0]  %s472, 512, %s470, %s458, 128, 128, 8
        $region44: #{tpu_custom_call.1} parent=39 // pred_fallthru
          _
      $region40: #{tpu_custom_call.1} parent=5 // pred_fallthru
        _
      %p478 = scmp.le.s32.totalorder 2, %s14
      // Predicated region
      $region45: #{tpu_custom_call.1} parent=5 // pred_check
        %p479 = pneg %p478
      $region46: #{tpu_custom_call.1} parent=5 // pred_check_branch
        %481 = sbr.rel (%p479) target = $region48
      $region47: #{tpu_custom_call.1} parent=5 // pred_region
        %s482 = ssub.s32 %s14, 2
        // Predicated region
        $region49: #{tpu_custom_call.1} parent=47 // pred_check
          %p483 = pneg %p158
        $region50: #{tpu_custom_call.1} parent=47 // pred_check_branch
          %485 = sbr.rel (%p483) target = $region52
        $region51: #{tpu_custom_call.1} parent=47 // pred_region
          %s486 = sand.u32 %s143, 1
          %s487 = scalar_lea.sflag [#allocation3], %s486
          %s488 = sand.u32 %s143, 1
          %s489 = smul.addr %s488, 32
          %s490 = scalar_lea.vmem [#allocation2], %s489
          %491 = dma.done %s487, 512
        $region52: #{tpu_custom_call.1} parent=47 // pred_fallthru
          _
      $region48: #{tpu_custom_call.1} parent=5 // pred_fallthru
        _
    $region6: #{tpu_custom_call.1} parent=1 // loop_footer
      %s18 = sadd.s32 1, %s14
    $region7: #{tpu_custom_call.1} parent=1 // loop_footer_branch
      %13 = sbr.rel target = $region3
    $region8: #{tpu_custom_call.1} parent=1 // loop_exit
      _
    %492 = vsyncpa [#allocation3], 1
    %s493 = scalar_lea.sflag [#allocation3], 1
    %494 = vsyncpa %s493, 1

</llo_original>
